<compile_context>
chip_gen: v5e
topology: v5e:2x2
jax: 0.10.0
libtpu: 0.0.40
codegen_flags: <defaults>
</compile_context>

<pallas_src>
import jax
import jax.numpy as jnp
from jax.experimental import pallas as pl
from jax.experimental.pallas import tpu as pltpu

LANE = 128     # TPU vreg lane width   (last-dim tiling unit)
SUBLANE = 8    # TPU vreg sublane width (second-to-last-dim tiling unit, f32)


def _round_up(x, m):
    return (x + m - 1) // m * m


def _pad2d(a, shape):
    """Zero-pad a 2-D array up to `shape` (top-left aligned)."""
    return jnp.zeros(shape, a.dtype).at[: a.shape[0], : a.shape[1]].set(a)


# ------------------------------ kernel bodies --------------------------------
def _drift(t, y, lat, w1y, w1l, w1t, b1, w2, b2, w3, b3):
    """dy = W3 tanh(W2 tanh(y@W1y + lat@W1l + t*W1t + b1) + b2) + b3.

    The time column of the original W1 is folded into the bias, so the
    concat([y, t, latent]) input is never materialized.  Matmuls run on the
    MXU with f32 accumulation; bias-add / tanh stay in f32 on the VPU/EUP.
    """
    cd = w1y.dtype  # matmul input dtype (f32 here; bf16 also works on v6e/v5e)
    b1_eff = b1.astype(jnp.float32) + t * w1t.astype(jnp.float32)
    h1 = jnp.tanh(
        jnp.dot(y.astype(cd), w1y, preferred_element_type=jnp.float32)
        + jnp.dot(lat.astype(cd), w1l, preferred_element_type=jnp.float32)
        + b1_eff)
    h2 = jnp.tanh(
        jnp.dot(h1.astype(cd), w2, preferred_element_type=jnp.float32)
        + b2.astype(jnp.float32))
    return (jnp.dot(h2.astype(cd), w3, preferred_element_type=jnp.float32)
            + b3.astype(jnp.float32))


def _drift_eval_kernel(t_ref, y_ref, lat_ref, w1y_ref, w1l_ref, w1t_ref,
                       b1_ref, w2_ref, b2_ref, w3_ref, b3_ref, dy_ref):
    """Single drift evaluation (ODEfunc.forward path).  t is an SMEM scalar."""
    dy = _drift(t_ref[0], y_ref[...], lat_ref[...],
                w1y_ref[...], w1l_ref[...], w1t_ref[...], b1_ref[...],
                w2_ref[...], b2_ref[...], w3_ref[...], b3_ref[...])
    dy_ref[...] = dy.astype(dy_ref.dtype)


def _euler_fused_kernel(t0dt_ref, y0_ref, lat_ref, w1y_ref, w1l_ref, w1t_ref,
                        b1_ref, w2_ref, b2_ref, w3_ref, b3_ref, y_ref):
    """Whole fixed-step Euler integration in ONE pallas_call.

    grid = (batch_tiles, n_steps).  The output block index ignores the step
    axis, so y_ref is VMEM-resident across all steps (the ODE state carry);
    weight BlockSpecs return (0, 0) everywhere so weights are DMA'd once.
    """
    step = pl.program_id(1)

    @pl.when(step == 0)
    def _():
        y_ref[...] = y0_ref[...]

    t0 = t0dt_ref[0]
    dt = t0dt_ref[1]
    t = t0 + dt * step.astype(jnp.float32)

    y = y_ref[...]
    dy = _drift(t, y, lat_ref[...],
                w1y_ref[...], w1l_ref[...], w1t_ref[...], b1_ref[...],
                w2_ref[...], b2_ref[...], w3_ref[...], b3_ref[...])
    y_ref[...] = y + dt * dy.astype(y_ref.dtype)


# ------------------------------ pallas wrappers -------------------------------
def drift_mlp_pallas(t, y, latent, params, *, block_b=128):
    """One drift evaluation dy = diffeq(t, y, latent) as a Pallas kernel."""
    w1y, w1l, w1t, b1, w2, b2, w3, b3 = params
    B, dim = y.shape
    L = latent.shape[-1]
    Hp = w2.shape[0]
    Dp = w3.shape[1]
    out_dtype = y.dtype

    tb = min(_round_up(B, SUBLANE), block_b)
    Bp = _round_up(B, tb)
    if Bp != B:
        y = jnp.pad(y, ((0, Bp - B), (0, 0)))
        latent = jnp.pad(latent, ((0, Bp - B), (0, 0)))
    t_smem = jnp.reshape(jnp.asarray(t, jnp.float32), (1,))

    flops = 2 * Bp * (dim * Hp + L * Hp + Hp * Hp + Hp * Dp)
    bytes_accessed = 4 * (Bp * (dim + L + Dp) + dim * Hp + L * Hp
                          + 3 * Hp + Hp * Hp + Hp * Dp + Dp)

    dy_pad = pl.pallas_call(
        _drift_eval_kernel,
        out_shape=jax.ShapeDtypeStruct((Bp, Dp), out_dtype),
        grid_spec=pltpu.PrefetchScalarGridSpec(
            num_scalar_prefetch=0,
            grid=(Bp // tb,),
            in_specs=[
                pl.BlockSpec(memory_space=pltpu.MemorySpace.SMEM),  # t scalar
                pl.BlockSpec((tb, dim), lambda b: (b, 0)),          # y
                pl.BlockSpec((tb, L), lambda b: (b, 0)),            # latent
                pl.BlockSpec((dim, Hp), lambda b: (0, 0)),          # w1_y
                pl.BlockSpec((L, Hp), lambda b: (0, 0)),            # w1_latent
                pl.BlockSpec((1, Hp), lambda b: (0, 0)),            # w1_t row
                pl.BlockSpec((1, Hp), lambda b: (0, 0)),            # b1
                pl.BlockSpec((Hp, Hp), lambda b: (0, 0)),           # w2
                pl.BlockSpec((1, Hp), lambda b: (0, 0)),            # b2
                pl.BlockSpec((Hp, Dp), lambda b: (0, 0)),           # w3
                pl.BlockSpec((1, Dp), lambda b: (0, 0)),            # b3
            ],
            out_specs=pl.BlockSpec((tb, Dp), lambda b: (b, 0)),     # lane-dense
        ),
        compiler_params=pltpu.CompilerParams(
            dimension_semantics=("parallel",)),
        cost_estimate=pl.CostEstimate(
            flops=int(flops),
            transcendentals=int(2 * Bp * Hp),
            bytes_accessed=int(bytes_accessed)),
    )(t_smem, y, latent, w1y, w1l, w1t, b1, w2, b2, w3, b3)
    return dy_pad[:B, :dim]


def euler_integrate_pallas(y0, latent, t0, dt, n_steps, fused_params, dim,
                           *, block_b=128):
    """Fixed-step Euler ODE solve, fully fused into one pallas_call."""
    w1y, w1l, w1t, b1, w2, b2, w3, b3 = fused_params
    B = y0.shape[0]
    L = latent.shape[-1]
    Dp = w1y.shape[0]   # row-padded so the state can be carried lane-dense
    Hp = w1y.shape[1]

    tb = min(_round_up(B, SUBLANE), block_b)
    Bp = _round_up(B, tb)

    y0p = jnp.zeros((Bp, Dp), jnp.float32).at[:B, :dim].set(y0)
    latp = latent if Bp == B else jnp.pad(latent, ((0, Bp - B), (0, 0)))
    t0dt = jnp.array([t0, dt], jnp.float32)

    y_fin = pl.pallas_call(
        _euler_fused_kernel,
        out_shape=jax.ShapeDtypeStruct((Bp, Dp), jnp.float32),
        grid_spec=pltpu.PrefetchScalarGridSpec(
            num_scalar_prefetch=0,
            grid=(Bp // tb, n_steps),
            in_specs=[
                pl.BlockSpec(memory_space=pltpu.MemorySpace.SMEM),   # (t0, dt)
                pl.BlockSpec((tb, Dp), lambda b, s: (b, 0)),         # y0
                pl.BlockSpec((tb, L), lambda b, s: (b, 0)),          # latent
                pl.BlockSpec((Dp, Hp), lambda b, s: (0, 0)),         # w1_y (padded rows)
                pl.BlockSpec((L, Hp), lambda b, s: (0, 0)),          # w1_latent
                pl.BlockSpec((1, Hp), lambda b, s: (0, 0)),          # w1_t row
                pl.BlockSpec((1, Hp), lambda b, s: (0, 0)),          # b1
                pl.BlockSpec((Hp, Hp), lambda b, s: (0, 0)),         # w2
                pl.BlockSpec((1, Hp), lambda b, s: (0, 0)),          # b2
                pl.BlockSpec((Hp, Dp), lambda b, s: (0, 0)),         # w3
                pl.BlockSpec((1, Dp), lambda b, s: (0, 0)),          # b3
            ],
            out_specs=pl.BlockSpec((tb, Dp), lambda b, s: (b, 0)),
        ),
        compiler_params=pltpu.CompilerParams(
            dimension_semantics=("parallel", "arbitrary")),
    )(t0dt, y0p, latp, w1y, w1l, w1t, b1, w2, b2, w3, b3)
    return y_fin[:B, :dim]


# ------------------------------- module ports ---------------------------------
class DiffeqMLP:
    """Latent-ODE drift net: dy = MLP(concat([y, t, latent])).

    Weights are stored pre-split (y / t / latent rows of W1) and zero-padded
    to 128-lane-dense shapes so the Pallas kernels never materialize the
    concatenated input and every matmul output / dy store is lane-dense.
    """

    def __init__(self, dim, latent_dim, hidden, key, compute_dtype=jnp.float32):
        # TODO(synk): set compute_dtype=jnp.bfloat16 on v6e/v5e for MXU-rate
        # matmuls (f32 accumulation keeps accuracy); kept f32 so the self-check
        # below is tight.
        in_dim = dim + 1 + latent_dim
        k1, k2, k3, k4, k5, k6 = jax.random.split(key, 6)
        s1 = 1.0 / jnp.sqrt(in_dim)
        s2 = 1.0 / jnp.sqrt(hidden)
        w1 = jax.random.normal(k1, (in_dim, hidden), jnp.float32) * s1
        b1 = jax.random.normal(k4, (1, hidden), jnp.float32) * 0.1
        w2 = jax.random.normal(k2, (hidden, hidden), jnp.float32) * s2
        b2 = jax.random.normal(k5, (1, hidden), jnp.float32) * 0.1
        w3 = jax.random.normal(k3, (hidden, dim), jnp.float32) * s2
        b3 = jax.random.normal(k6, (1, dim), jnp.float32) * 0.1

        self.dim = dim
        self.latent_dim = latent_dim
        self.hidden = hidden
        self.ref_params = (w1, b1, w2, b2, w3, b3)   # for testing only

        Hp = _round_up(hidden, LANE)
        Dp = _round_up(dim, LANE)
        cd = compute_dtype
        w1y = _pad2d(w1[:dim], (dim, Hp)).astype(cd)
        w1yp = _pad2d(w1[:dim], (Dp, Hp)).astype(cd)    # extra zero rows for fused path
        w1t = _pad2d(w1[dim:dim + 1], (1, Hp)).astype(cd)
        w1l = _pad2d(w1[dim + 1:], (latent_dim, Hp)).astype(cd)
        b1p = _pad2d(b1, (1, Hp))
        w2p = _pad2d(w2, (Hp, Hp)).astype(cd)
        b2p = _pad2d(b2, (1, Hp))
        w3p = _pad2d(w3, (Hp, Dp)).astype(cd)
        b3p = _pad2d(b3, (1, Dp))
        self.eval_params = (w1y, w1l, w1t, b1p, w2p, b2p, w3p, b3p)
        self.fused_params = (w1yp, w1l, w1t, b1p, w2p, b2p, w3p, b3p)

    def __call__(self, t, y, latent=None):
        B = y.shape[0]
        if latent is None:
            latent = jnp.zeros((B, self.latent_dim), jnp.float32)
        return drift_mlp_pallas(t, y, latent, self.eval_params)


class ODEfunc:
    """JAX/Pallas port of nfsde ODEfunc."""

    def __init__(self, diffeq, has_latent=False):
        self.diffeq = diffeq
        self.has_latent = has_latent
        self._num_evals = 0.0

    def before_odeint(self):
        self._num_evals = 0.0

    def num_evals(self):
        return self._num_evals

    def forward(self, t, states):
        # TODO(synk): host-side counter counts traces (not evals) once this is
        # wrapped in jax.jit / lax.scan by a real ODE solver.
        self._num_evals += 1
        y = states[0]
        latent = None
        if len(states) == 2 and self.has_latent:
            latent = states[1]
        return self.diffeq(t, y, latent=latent)

    __call__ = forward

    # Performance path: whole fixed-step Euler solve in one pallas_call
    # (weights DMA'd once, state kept VMEM-resident across all steps).
    def integrate_euler(self, y0, latent, t0, dt, n_steps):
        self._num_evals += n_steps
        if not self.has_latent or latent is None:
            latent = jnp.zeros((y0.shape[0], self.diffeq.latent_dim),
                               jnp.float32)
        return euler_integrate_pallas(y0, latent, t0, dt, n_steps,
                                      self.diffeq.fused_params,
                                      self.diffeq.dim)


# ----------------------------------- main --------------------------------------
if __name__ == "__main__":
    key = jax.random.PRNGKey(0)
    k_y, k_lat, k_params = jax.random.split(key, 3)

    batch, dim, latent_dim, hidden = 8, 32, 16, 64
    y = jax.random.normal(k_y, (batch, dim), jnp.float32)
    latent = jax.random.normal(k_lat, (batch, latent_dim), jnp.float32)
    t = jnp.float32(0.5)

    diffeq = DiffeqMLP(dim, latent_dim, hidden, k_params)
    odefunc = ODEfunc(diffeq, has_latent=True)
    odefunc.before_odeint()

    # --- single drift evaluation (original ODEfunc.forward semantics) --------
    dy = odefunc.forward(t, (y, latent))
    dy = jax.block_until_ready(dy)

    w1, b1, w2, b2, w3, b3 = diffeq.ref_params

    def ref_drift(tt, yy, ll):
        x = jnp.concatenate(
            [yy, jnp.full((yy.shape[0], 1), tt, jnp.float32), ll], axis=-1)
        h1 = jnp.tanh(x @ w1 + b1)
        h2 = jnp.tanh(h1 @ w2 + b2)
        return h2 @ w3 + b3

    dy_ref = ref_drift(t, y, latent)
    assert dy.shape == (batch, dim)
    assert odefunc.num_evals() == 1
    assert jnp.allclose(dy, dy_ref, atol=1e-4, rtol=1e-4), \
        float(jnp.max(jnp.abs(dy - dy_ref)))

    # --- fused fixed-step Euler solve (one pallas_call for all steps) --------
    t0, dt, n_steps = 0.1, 0.05, 16
    y_fin = odefunc.integrate_euler(y, latent, t0, dt, n_steps)
    y_fin = jax.block_until_ready(y_fin)

    y_ref_state = y
    for i in range(n_steps):
        y_ref_state = y_ref_state + dt * ref_drift(t0 + dt * i,
                                                   y_ref_state, latent)
    assert y_fin.shape == (batch, dim)
    assert odefunc.num_evals() == 1 + n_steps
    assert jnp.allclose(y_fin, y_ref_state, atol=1e-3, rtol=1e-3), \
        float(jnp.max(jnp.abs(y_fin - y_ref_state)))

    print("KERNEL_OK")
</pallas_src>

<mosaic_0001>
module attributes {stable_mosaic.version = 11 : i64} {
  func.func @_drift_eval_kernel(%arg0: i32, %arg1: memref<1xf32, #tpu.memory_space<smem>>, %arg2: memref<8x32xf32, #tpu.memory_space<vmem>>, %arg3: memref<8x16xf32, #tpu.memory_space<vmem>>, %arg4: memref<32x128xf32, #tpu.memory_space<vmem>>, %arg5: memref<16x128xf32, #tpu.memory_space<vmem>>, %arg6: memref<1x128xf32, #tpu.memory_space<vmem>>, %arg7: memref<1x128xf32, #tpu.memory_space<vmem>>, %arg8: memref<128x128xf32, #tpu.memory_space<vmem>>, %arg9: memref<1x128xf32, #tpu.memory_space<vmem>>, %arg10: memref<128x128xf32, #tpu.memory_space<vmem>>, %arg11: memref<1x128xf32, #tpu.memory_space<vmem>>, %arg12: memref<8x128xf32, #tpu.memory_space<vmem>>) attributes {dimension_semantics = [#tpu.dimension_semantics<parallel>], iteration_bounds = array<i64: 1>, scalar_prefetch = 0 : i64, scratch_operands = 0 : i64, tpu.core_type = #tpu.core_type<tc>, window_params = [{transform_indices = @transform_0, window_bounds = array<i64: 1>}, {transform_indices = @transform_1, window_bounds = array<i64: 8, 32>}, {transform_indices = @transform_2, window_bounds = array<i64: 8, 16>}, {pipeline_mode = #tpu.pipeline_mode<synchronous>, transform_indices = @transform_3, window_bounds = array<i64: 32, 128>}, {pipeline_mode = #tpu.pipeline_mode<synchronous>, transform_indices = @transform_4, window_bounds = array<i64: 16, 128>}, {pipeline_mode = #tpu.pipeline_mode<synchronous>, transform_indices = @transform_5, window_bounds = array<i64: 1, 128>}, {pipeline_mode = #tpu.pipeline_mode<synchronous>, transform_indices = @transform_6, window_bounds = array<i64: 1, 128>}, {pipeline_mode = #tpu.pipeline_mode<synchronous>, transform_indices = @transform_7, window_bounds = array<i64: 128, 128>}, {pipeline_mode = #tpu.pipeline_mode<synchronous>, transform_indices = @transform_8, window_bounds = array<i64: 1, 128>}, {pipeline_mode = #tpu.pipeline_mode<synchronous>, transform_indices = @transform_9, window_bounds = array<i64: 128, 128>}, {pipeline_mode = #tpu.pipeline_mode<synchronous>, transform_indices = @transform_10, window_bounds = array<i64: 1, 128>}, {transform_indices = @transform_11, window_bounds = array<i64: 8, 128>}]} {
    %c0 = arith.constant 0 : index
    %0 = memref.load %arg1[%c0] : memref<1xf32, #tpu.memory_space<smem>>
    %c0_0 = arith.constant 0 : index
    %c0_1 = arith.constant 0 : index
    %1 = vector.load %arg2[%c0_0, %c0_1] : memref<8x32xf32, #tpu.memory_space<vmem>>, vector<8x32xf32>
    %c0_2 = arith.constant 0 : index
    %c0_3 = arith.constant 0 : index
    %2 = vector.load %arg3[%c0_2, %c0_3] : memref<8x16xf32, #tpu.memory_space<vmem>>, vector<8x16xf32>
    %c0_4 = arith.constant 0 : index
    %c0_5 = arith.constant 0 : index
    %3 = vector.load %arg4[%c0_4, %c0_5] : memref<32x128xf32, #tpu.memory_space<vmem>>, vector<32x128xf32>
    %c0_6 = arith.constant 0 : index
    %c0_7 = arith.constant 0 : index
    %4 = vector.load %arg5[%c0_6, %c0_7] : memref<16x128xf32, #tpu.memory_space<vmem>>, vector<16x128xf32>
    %c0_8 = arith.constant 0 : index
    %c0_9 = arith.constant 0 : index
    %5 = vector.load %arg6[%c0_8, %c0_9] : memref<1x128xf32, #tpu.memory_space<vmem>>, vector<1x128xf32>
    %c0_10 = arith.constant 0 : index
    %c0_11 = arith.constant 0 : index
    %6 = vector.load %arg7[%c0_10, %c0_11] : memref<1x128xf32, #tpu.memory_space<vmem>>, vector<1x128xf32>
    %c0_12 = arith.constant 0 : index
    %c0_13 = arith.constant 0 : index
    %7 = vector.load %arg8[%c0_12, %c0_13] : memref<128x128xf32, #tpu.memory_space<vmem>>, vector<128x128xf32>
    %c0_14 = arith.constant 0 : index
    %c0_15 = arith.constant 0 : index
    %8 = vector.load %arg9[%c0_14, %c0_15] : memref<1x128xf32, #tpu.memory_space<vmem>>, vector<1x128xf32>
    %c0_16 = arith.constant 0 : index
    %c0_17 = arith.constant 0 : index
    %9 = vector.load %arg10[%c0_16, %c0_17] : memref<128x128xf32, #tpu.memory_space<vmem>>, vector<128x128xf32>
    %c0_18 = arith.constant 0 : index
    %c0_19 = arith.constant 0 : index
    %10 = vector.load %arg11[%c0_18, %c0_19] : memref<1x128xf32, #tpu.memory_space<vmem>>, vector<1x128xf32>
    %11 = vector.broadcast %0 : f32 to vector<1x128xf32>
    %12 = arith.mulf %11, %5 : vector<1x128xf32>
    %13 = arith.addf %6, %12 : vector<1x128xf32>
    %cst = arith.constant dense<0.000000e+00> : vector<8x128xf32>
    %14 = tpu.matmul %1, %3, %cst {dimension_numbers = #tpu.dot_dimension_numbers<[1], [0], [0], [1], [0, 0, 1, 1], [], []>} : vector<8x32xf32>, vector<32x128xf32>, vector<8x128xf32> -> vector<8x128xf32>
    %cst_20 = arith.constant dense<0.000000e+00> : vector<8x128xf32>
    %15 = tpu.matmul %2, %4, %cst_20 {dimension_numbers = #tpu.dot_dimension_numbers<[1], [0], [0], [1], [0, 0, 1, 1], [], []>} : vector<8x16xf32>, vector<16x128xf32>, vector<8x128xf32> -> vector<8x128xf32>
    %16 = arith.addf %14, %15 : vector<8x128xf32>
    %17 = vector.broadcast %13 : vector<1x128xf32> to vector<8x128xf32>
    %18 = arith.addf %16, %17 : vector<8x128xf32>
    %19 = math.tanh %18 : vector<8x128xf32>
    %cst_21 = arith.constant dense<0.000000e+00> : vector<8x128xf32>
    %20 = tpu.matmul %19, %7, %cst_21 {dimension_numbers = #tpu.dot_dimension_numbers<[1], [0], [0], [1], [0, 0, 1, 1], [], []>} : vector<8x128xf32>, vector<128x128xf32>, vector<8x128xf32> -> vector<8x128xf32>
    %21 = vector.broadcast %8 : vector<1x128xf32> to vector<8x128xf32>
    %22 = arith.addf %20, %21 : vector<8x128xf32>
    %23 = math.tanh %22 : vector<8x128xf32>
    %cst_22 = arith.constant dense<0.000000e+00> : vector<8x128xf32>
    %24 = tpu.matmul %23, %9, %cst_22 {dimension_numbers = #tpu.dot_dimension_numbers<[1], [0], [0], [1], [0, 0, 1, 1], [], []>} : vector<8x128xf32>, vector<128x128xf32>, vector<8x128xf32> -> vector<8x128xf32>
    %25 = vector.broadcast %10 : vector<1x128xf32> to vector<8x128xf32>
    %26 = arith.addf %24, %25 : vector<8x128xf32>
    %c0_23 = arith.constant 0 : index
    %c0_24 = arith.constant 0 : index
    %27 = vector.load %arg12[%c0_23, %c0_24] : memref<8x128xf32, #tpu.memory_space<vmem>>, vector<8x128xf32>
    tpu.vector_store %arg12[%c0_23, %c0_24], %26 {strides = array<i32>} : memref<8x128xf32, #tpu.memory_space<vmem>>, vector<8x128xf32>,
    return
  }
  func.func @transform_0(%arg0: i32) -> i32 {
    %c0_i32 = arith.constant 0 : i32
    %c0_i32_0 = arith.constant 0 : i32
    return %c0_i32 : i32
  }
  func.func @transform_1(%arg0: i32) -> (i32, i32) {
    %c0_i32 = arith.constant 0 : i32
    %c0_i32_0 = arith.constant 0 : i32
    return %arg0, %c0_i32 : i32, i32
  }
  func.func @transform_2(%arg0: i32) -> (i32, i32) {
    %c0_i32 = arith.constant 0 : i32
    %c0_i32_0 = arith.constant 0 : i32
    return %arg0, %c0_i32 : i32, i32
  }
  func.func @transform_3(%arg0: i32) -> (i32, i32) {
    %c0_i32 = arith.constant 0 : i32
    %c0_i32_0 = arith.constant 0 : i32
    %c0_i32_1 = arith.constant 0 : i32
    return %c0_i32, %c0_i32_0 : i32, i32
  }
  func.func @transform_4(%arg0: i32) -> (i32, i32) {
    %c0_i32 = arith.constant 0 : i32
    %c0_i32_0 = arith.constant 0 : i32
    %c0_i32_1 = arith.constant 0 : i32
    return %c0_i32, %c0_i32_0 : i32, i32
  }
  func.func @transform_5(%arg0: i32) -> (i32, i32) {
    %c0_i32 = arith.constant 0 : i32
    %c0_i32_0 = arith.constant 0 : i32
    %c0_i32_1 = arith.constant 0 : i32
    return %c0_i32, %c0_i32_0 : i32, i32
  }
  func.func @transform_6(%arg0: i32) -> (i32, i32) {
    %c0_i32 = arith.constant 0 : i32
    %c0_i32_0 = arith.constant 0 : i32
    %c0_i32_1 = arith.constant 0 : i32
    return %c0_i32, %c0_i32_0 : i32, i32
  }
  func.func @transform_7(%arg0: i32) -> (i32, i32) {
    %c0_i32 = arith.constant 0 : i32
    %c0_i32_0 = arith.constant 0 : i32
    %c0_i32_1 = arith.constant 0 : i32
    return %c0_i32, %c0_i32_0 : i32, i32
  }
  func.func @transform_8(%arg0: i32) -> (i32, i32) {
    %c0_i32 = arith.constant 0 : i32
    %c0_i32_0 = arith.constant 0 : i32
    %c0_i32_1 = arith.constant 0 : i32
    return %c0_i32, %c0_i32_0 : i32, i32
  }
  func.func @transform_9(%arg0: i32) -> (i32, i32) {
    %c0_i32 = arith.constant 0 : i32
    %c0_i32_0 = arith.constant 0 : i32
    %c0_i32_1 = arith.constant 0 : i32
    return %c0_i32, %c0_i32_0 : i32, i32
  }
  func.func @transform_10(%arg0: i32) -> (i32, i32) {
    %c0_i32 = arith.constant 0 : i32
    %c0_i32_0 = arith.constant 0 : i32
    %c0_i32_1 = arith.constant 0 : i32
    return %c0_i32, %c0_i32_0 : i32, i32
  }
  func.func @transform_11(%arg0: i32) -> (i32, i32) {
    %c0_i32 = arith.constant 0 : i32
    %c0_i32_0 = arith.constant 0 : i32
    return %arg0, %c0_i32 : i32, i32
  }
}

</mosaic_0001>

<llo_original>
// kernel: tpu_custom_call.1
$region0: #{tpu_custom_call.1}
  #allocation0 [shape = 'u32[]', space=smem, size = 0x4, offset = 0x4, fixed_abs, tag = 'smem constant byte address 0x4 - core index']
  #allocation1 [shape = 'u32[72,128]{1,0:T(1,128)}', space=vmem, size = 0x9000, scoped, tag = 'internal scratch']
  #allocation2 [shape = 'f32[1]{0:T(128)S(6)}', space=smem, size = 0x200, scoped, tag = 'scoped memory for tpu_custom_call.1']
  %s0 = inlined_call_operand.<no memory space> [shape: f32[1], index: 0, kind: input, shape index: {}]
  %s1 = inlined_call_operand.hbm [shape: f32[8,32], index: 1, kind: input, shape index: {}]
  %s2 = inlined_call_operand.hbm [shape: f32[8,16], index: 2, kind: input, shape index: {}]
  %s3 = inlined_call_operand.hbm [shape: f32[32,128], index: 3, kind: input, shape index: {}]
  %s4 = inlined_call_operand.hbm [shape: f32[16,128], index: 4, kind: input, shape index: {}]
  %s5 = inlined_call_operand.vmem [shape: f32[1,128], index: 5, kind: input, shape index: {}]
  %s6 = inlined_call_operand.vmem [shape: f32[1,128], index: 6, kind: input, shape index: {}]
  %s7 = inlined_call_operand.hbm [shape: f32[128,128], index: 7, kind: input, shape index: {}]
  %s8 = inlined_call_operand.vmem [shape: f32[1,128], index: 8, kind: input, shape index: {}]
  %s9 = inlined_call_operand.hbm [shape: f32[128,128], index: 9, kind: input, shape index: {}]
  %s10 = inlined_call_operand.vmem [shape: f32[1,128], index: 10, kind: input, shape index: {}]
  %s11 = inlined_call_operand.hbm [shape: f32[8,128], index: 11, kind: output, shape index: {}]
  %s12 = sld [smem:[#allocation0]]
  $region78: #{tpu_custom_call.1} parent=0
    _
  %s14 = ssub.s32 1, %s12
  %s15 = scalar_select 0, %s14, %s12
  %16 = sst [smem:[#allocation2]] %s0
  $region1: #{tpu_custom_call.1} parent=0
    #allocation3 [shape = 'u8[4096]{0}', space=vmem, size = 0x1000, scoped, tag = 'input window, operand 1, single buffered']
    #allocation4 [shape = 's32[1]{0}', space=sflag, size = 0x4, scoped, tag = 'scoped memory for tpu_custom_call.1']
    #allocation5 [shape = 's32[1]{0}', space=sflag, size = 0x4, scoped, tag = 'scoped memory for tpu_custom_call.1']
    #allocation6 [shape = 'u8[4096]{0}', space=vmem, size = 0x1000, scoped, tag = 'input window, operand 2, single buffered']
    #allocation7 [shape = 's32[1]{0}', space=sflag, size = 0x4, scoped, tag = 'scoped memory for tpu_custom_call.1']
    #allocation8 [shape = 'u8[16384]{0}', space=vmem, size = 0x4000, scoped, tag = 'input window, operand 3, single buffered']
    #allocation9 [shape = 'u8[8192]{0}', space=vmem, size = 0x2000, scoped, tag = 'input window, operand 4, single buffered']
    #allocation10 [shape = 's32[1]{0}', space=sflag, size = 0x4, scoped, tag = 'scoped memory for tpu_custom_call.1']
    #allocation11 [shape = 'u8[65536]{0}', space=vmem, size = 0x10000, scoped, tag = 'input window, operand 7, single buffered']
    #allocation12 [shape = 'u8[65536]{0}', space=vmem, size = 0x10000, scoped, tag = 'input window, operand 9, single buffered']
    #allocation13 [shape = 's32[1]{0}', space=sflag, size = 0x4, scoped, tag = 'scoped memory for tpu_custom_call.1']
    #allocation14 [shape = 'u8[4096]{0}', space=vmem, size = 0x1000, scoped, tag = 'output window, operand 0, single buffered']
    %17 = vsyncpa [#allocation4], 0
    %18 = vsyncpa [#allocation7], 0
    %19 = vsyncpa [#allocation10], 0
    %20 = vsyncpa [#allocation13], 0
    %21 = vsyncpa [#allocation5], 0
    // Predicated region
    $region2: #{tpu_custom_call.1} parent=1 // pred_check
      _
    $region3: #{tpu_custom_call.1} parent=1 // pred_check_branch
      %23 = sbr.rel (0) target = $region5
    $region4: #{tpu_custom_call.1} parent=1 // pred_region
      _
    $region5: #{tpu_custom_call.1} parent=1 // pred_fallthru
      _
    // Predicated region
    $region6: #{tpu_custom_call.1} parent=1 // pred_check
      _
    $region7: #{tpu_custom_call.1} parent=1 // pred_check_branch
      %25 = sbr.rel (0) target = $region9
    $region8: #{tpu_custom_call.1} parent=1 // pred_region
      %27 = vsyncadd [#allocation4], 0
      %s29 = sshll.u32 %s1, 4
      %s30 = int_to_ptr.hbm [resolvable:$true] %s29
      %s31 = sshll.u32 [#allocation3], 4
      %s32 = int_to_ptr.vmem [resolvable:$true] %s31
      %34 = dma.hbm_to_vmem [thread:$0]  %s30, 128, %s32, [#allocation4]
    $region9: #{tpu_custom_call.1} parent=1 // pred_fallthru
      _
    // Predicated region
    $region10: #{tpu_custom_call.1} parent=1 // pred_check
      _
    $region11: #{tpu_custom_call.1} parent=1 // pred_check_branch
      %36 = sbr.rel (0) target = $region13
    $region12: #{tpu_custom_call.1} parent=1 // pred_region
      %38 = vsyncadd [#allocation7], 0
      %s40 = sshll.u32 %s2, 4
      %s41 = int_to_ptr.hbm [resolvable:$true] %s40
      %s42 = sshll.u32 [#allocation6], 4
      %s43 = int_to_ptr.vmem [resolvable:$true] %s42
      %45 = dma.hbm_to_vmem [thread:$0]  %s41, 128, %s43, [#allocation7]
    $region13: #{tpu_custom_call.1} parent=1 // pred_fallthru
      _
    // Predicated region
    $region14: #{tpu_custom_call.1} parent=1 // pred_check
      _
    $region15: #{tpu_custom_call.1} parent=1 // pred_check_branch
      %47 = sbr.rel (0) target = $region17
    $region16: #{tpu_custom_call.1} parent=1 // pred_region
      %49 = vsyncadd [#allocation7], 0
      %s50 = sshll.u32 %s3, 4
      %s51 = int_to_ptr.hbm [resolvable:$true] %s50
      %s52 = sshll.u32 [#allocation8], 4
      %s53 = int_to_ptr.vmem [resolvable:$true] %s52
      %58 = dma.hbm_to_vmem [thread:$0]  %s51, 512, %s53, [#allocation7], 128, 128, 8
    $region17: #{tpu_custom_call.1} parent=1 // pred_fallthru
      _
    // Predicated region
    $region18: #{tpu_custom_call.1} parent=1 // pred_check
      _
    $region19: #{tpu_custom_call.1} parent=1 // pred_check_branch
      %60 = sbr.rel (0) target = $region21
    $region20: #{tpu_custom_call.1} parent=1 // pred_region
      %62 = vsyncadd [#allocation10], 0
      %s63 = sshll.u32 %s4, 4
      %s64 = int_to_ptr.hbm [resolvable:$true] %s63
      %s65 = sshll.u32 [#allocation9], 4
      %s66 = int_to_ptr.vmem [resolvable:$true] %s65
      %71 = dma.hbm_to_vmem [thread:$0]  %s64, 256, %s66, [#allocation10], 128, 128, 8
    $region21: #{tpu_custom_call.1} parent=1 // pred_fallthru
      _
    // Predicated region
    $region22: #{tpu_custom_call.1} parent=1 // pred_check
      _
    $region23: #{tpu_custom_call.1} parent=1 // pred_check_branch
      %73 = sbr.rel (0) target = $region25
    $region24: #{tpu_custom_call.1} parent=1 // pred_region
      _
    $region25: #{tpu_custom_call.1} parent=1 // pred_fallthru
      _
    // Predicated region
    $region26: #{tpu_custom_call.1} parent=1 // pred_check
      _
    $region27: #{tpu_custom_call.1} parent=1 // pred_check_branch
      %75 = sbr.rel (0) target = $region29
    $region28: #{tpu_custom_call.1} parent=1 // pred_region
      _
    $region29: #{tpu_custom_call.1} parent=1 // pred_fallthru
      _
    // Predicated region
    $region30: #{tpu_custom_call.1} parent=1 // pred_check
      _
    $region31: #{tpu_custom_call.1} parent=1 // pred_check_branch
      %77 = sbr.rel (0) target = $region33
    $region32: #{tpu_custom_call.1} parent=1 // pred_region
      %79 = vsyncadd [#allocation10], 0
      %s80 = sshll.u32 %s7, 4
      %s81 = int_to_ptr.hbm [resolvable:$true] %s80
      %s82 = sshll.u32 [#allocation11], 4
      %s83 = int_to_ptr.vmem [resolvable:$true] %s82
      %88 = dma.hbm_to_vmem [thread:$0]  %s81, 2048, %s83, [#allocation10], 128, 128, 8
    $region33: #{tpu_custom_call.1} parent=1 // pred_fallthru
      _
    // Predicated region
    $region34: #{tpu_custom_call.1} parent=1 // pred_check
      _
    $region35: #{tpu_custom_call.1} parent=1 // pred_check_branch
      %90 = sbr.rel (0) target = $region37
    $region36: #{tpu_custom_call.1} parent=1 // pred_region
      _
    $region37: #{tpu_custom_call.1} parent=1 // pred_fallthru
      _
    // Predicated region
    $region38: #{tpu_custom_call.1} parent=1 // pred_check
      _
    $region39: #{tpu_custom_call.1} parent=1 // pred_check_branch
      %92 = sbr.rel (0) target = $region41
    $region40: #{tpu_custom_call.1} parent=1 // pred_region
      %94 = vsyncadd [#allocation13], 0
      %s95 = sshll.u32 %s9, 4
      %s96 = int_to_ptr.hbm [resolvable:$true] %s95
      %s97 = sshll.u32 [#allocation12], 4
      %s98 = int_to_ptr.vmem [resolvable:$true] %s97
      %103 = dma.hbm_to_vmem [thread:$0]  %s96, 2048, %s98, [#allocation13], 128, 128, 8
    $region41: #{tpu_custom_call.1} parent=1 // pred_fallthru
      _
    // Predicated region
    $region42: #{tpu_custom_call.1} parent=1 // pred_check
      _
    $region43: #{tpu_custom_call.1} parent=1 // pred_check_branch
      %105 = sbr.rel (0) target = $region45
    $region44: #{tpu_custom_call.1} parent=1 // pred_region
      _
    $region45: #{tpu_custom_call.1} parent=1 // pred_fallthru
      _
    // Predicated region
    $region46: #{tpu_custom_call.1} parent=1 // pred_check
      _
    $region47: #{tpu_custom_call.1} parent=1 // pred_check_branch
      %107 = sbr.rel (0) target = $region49
    $region48: #{tpu_custom_call.1} parent=1 // pred_region
      %109 = dma.done [#allocation4], 128
    $region49: #{tpu_custom_call.1} parent=1 // pred_fallthru
      _
    // Predicated region
    $region50: #{tpu_custom_call.1} parent=1 // pred_check
      _
    $region51: #{tpu_custom_call.1} parent=1 // pred_check_branch
      %111 = sbr.rel (0) target = $region53
    $region52: #{tpu_custom_call.1} parent=1 // pred_region
      %113 = dma.done [#allocation7], 128
    $region53: #{tpu_custom_call.1} parent=1 // pred_fallthru
      _
    // Predicated region
    $region54: #{tpu_custom_call.1} parent=1 // pred_check
      _
    $region55: #{tpu_custom_call.1} parent=1 // pred_check_branch
      %115 = sbr.rel (0) target = $region57
    $region56: #{tpu_custom_call.1} parent=1 // pred_region
      %117 = dma.done [#allocation7], 512
    $region57: #{tpu_custom_call.1} parent=1 // pred_fallthru
      _
    // Predicated region
    $region58: #{tpu_custom_call.1} parent=1 // pred_check
      _
    $region59: #{tpu_custom_call.1} parent=1 // pred_check_branch
      %119 = sbr.rel (0) target = $region61
    $region60: #{tpu_custom_call.1} parent=1 // pred_region
      %121 = dma.done [#allocation10], 256
    $region61: #{tpu_custom_call.1} parent=1 // pred_fallthru
      _
    // Predicated region
    $region62: #{tpu_custom_call.1} parent=1 // pred_check
      _
    $region63: #{tpu_custom_call.1} parent=1 // pred_check_branch
      %123 = sbr.rel (0) target = $region65
    $region64: #{tpu_custom_call.1} parent=1 // pred_region
      %125 = dma.done [#allocation10], 2048
    $region65: #{tpu_custom_call.1} parent=1 // pred_fallthru
      _
    // Predicated region
    $region66: #{tpu_custom_call.1} parent=1 // pred_check
      _
    $region67: #{tpu_custom_call.1} parent=1 // pred_check_branch
      %127 = sbr.rel (0) target = $region69
    $region68: #{tpu_custom_call.1} parent=1 // pred_region
      %129 = dma.done [#allocation13], 2048
    $region69: #{tpu_custom_call.1} parent=1 // pred_fallthru
      _
    %s130 = sld [smem:[#allocation2]]
    %v131 = vld [vmem:[#allocation3] sm:$0xff]
    %v132 = vld [vmem:[#allocation6] sm:$0xff]
    %v133 = vld [vmem:[#allocation8] sm:$0xff]
    %v134 = vld [vmem:[#allocation8 + $0x8] sm:$0xff]
    %v135 = vld [vmem:[#allocation8 + $0x10] sm:$0xff]
    %v136 = vld [vmem:[#allocation8 + $0x18] sm:$0xff]
    %v137 = vld [vmem:[#allocation9] sm:$0xff]
    %v138 = vld [vmem:[#allocation9 + $0x8] sm:$0xff]
    %v139 = vld [vmem:[%s5] sm:$0x1]
    %v140 = vld [vmem:[%s6] sm:$0x1]
    %v141 = vld [vmem:[#allocation11] sm:$0xff]
    %v142 = vld [vmem:[#allocation11 + $0x8] sm:$0xff]
    %v143 = vld [vmem:[#allocation11 + $0x10] sm:$0xff]
    %v144 = vld [vmem:[#allocation11 + $0x18] sm:$0xff]
    %v145 = vld [vmem:[#allocation11 + $0x20] sm:$0xff]
    %v146 = vld [vmem:[#allocation11 + $0x28] sm:$0xff]
    %v147 = vld [vmem:[#allocation11 + $0x30] sm:$0xff]
    %v148 = vld [vmem:[#allocation11 + $0x38] sm:$0xff]
    %v149 = vld [vmem:[#allocation11 + $0x40] sm:$0xff]
    %v150 = vld [vmem:[#allocation11 + $0x48] sm:$0xff]
    %v151 = vld [vmem:[#allocation11 + $0x50] sm:$0xff]
    %v152 = vld [vmem:[#allocation11 + $0x58] sm:$0xff]
    %v153 = vld [vmem:[#allocation11 + $0x60] sm:$0xff]
    %v154 = vld [vmem:[#allocation11 + $0x68] sm:$0xff]
    %v155 = vld [vmem:[#allocation11 + $0x70] sm:$0xff]
    %v156 = vld [vmem:[#allocation11 + $0x78] sm:$0xff]
    %v157 = vld [vmem:[%s8] sm:$0x1]
    %v158 = vld [vmem:[#allocation12] sm:$0xff]
    %v159 = vld [vmem:[#allocation12 + $0x8] sm:$0xff]
    %v160 = vld [vmem:[#allocation12 + $0x10] sm:$0xff]
    %v161 = vld [vmem:[#allocation12 + $0x18] sm:$0xff]
    %v162 = vld [vmem:[#allocation12 + $0x20] sm:$0xff]
    %v163 = vld [vmem:[#allocation12 + $0x28] sm:$0xff]
    %v164 = vld [vmem:[#allocation12 + $0x30] sm:$0xff]
    %v165 = vld [vmem:[#allocation12 + $0x38] sm:$0xff]
    %v166 = vld [vmem:[#allocation12 + $0x40] sm:$0xff]
    %v167 = vld [vmem:[#allocation12 + $0x48] sm:$0xff]
    %v168 = vld [vmem:[#allocation12 + $0x50] sm:$0xff]
    %v169 = vld [vmem:[#allocation12 + $0x58] sm:$0xff]
    %v170 = vld [vmem:[#allocation12 + $0x60] sm:$0xff]
    %v171 = vld [vmem:[#allocation12 + $0x68] sm:$0xff]
    %v172 = vld [vmem:[#allocation12 + $0x70] sm:$0xff]
    %v173 = vld [vmem:[#allocation12 + $0x78] sm:$0xff]
    %v174 = vld [vmem:[%s10] sm:$0x1]
    %v175 = vstv %s130
    %v176 = vmul.f32 %v175, %v139
    %v177 = vadd.f32 %v140, %v176
    %vm178 = vcmask 130048
    %v180 = vsel %vm178, %v132, 0
    %182 = vmatpush.msra.mxu0 0.0
    %183 = vmatpush.msra.mxu0 0.0
    %184 = vmatpush.msra.mxu0 0.0
    %185 = vmatpush.msra.mxu0 0.0
    %186 = vmatpush.msra.mxu0 0.0
    %187 = vmatpush.msra.mxu0 0.0
    %188 = vmatpush.msra.mxu0 0.0
    %189 = vmatpush.msra.mxu0 0.0
    %190 = vmatpush.msra.mxu0 0.0
    %191 = vmatpush.msra.mxu0 0.0
    %192 = vmatpush.msra.mxu0 0.0
    %193 = vmatpush.msra.mxu0 0.0
    %194 = vmatpush.msra.mxu0 0.0
    %195 = vmatpush.msra.mxu0 0.0
    %196 = vmatpush.msra.mxu0 %v138
    %197 = vmatpush.msra.mxu0 %v137
    %198 = vmatmul.f32.gmra.mxu0 %v180
    %v199 = vpop.f32.mrf.mxu0
    %v200 = vadd.f32 0.0, %v199
    %201 = vdwg.mxu0
    %vm202 = vcmask 261120
    %v204 = vsel %vm202, %v131, 0
    %206 = vmatpush.msra.mxu0 0.0
    %207 = vmatpush.msra.mxu0 0.0
    %208 = vmatpush.msra.mxu0 0.0
    %209 = vmatpush.msra.mxu0 0.0
    %210 = vmatpush.msra.mxu0 0.0
    %211 = vmatpush.msra.mxu0 0.0
    %212 = vmatpush.msra.mxu0 0.0
    %213 = vmatpush.msra.mxu0 0.0
    %214 = vmatpush.msra.mxu0 0.0
    %215 = vmatpush.msra.mxu0 0.0
    %216 = vmatpush.msra.mxu0 0.0
    %217 = vmatpush.msra.mxu0 0.0
    %218 = vmatpush.msra.mxu0 %v136
    %219 = vmatpush.msra.mxu0 %v135
    %220 = vmatpush.msra.mxu0 %v134
    %221 = vmatpush.msra.mxu0 %v133
    %222 = vmatmul.f32.gmra.mxu0 %v204
    %v223 = vpop.f32.mrf.mxu0
    %v224 = vadd.f32 %v200, %v223
    %225 = vdwg.mxu0
    %v227 = vperm.slane %v177, 0
    %v229 = vadd.f32 %v224, %v227
    %v230 = vtanh.pop %v229
    %v232 = vperm.slane %v157, 0
    %234 = vmatpush.msra.mxu0 %v156
    %235 = vmatpush.msra.mxu0 %v155
    %236 = vmatpush.msra.mxu0 %v154
    %237 = vmatpush.msra.mxu0 %v153
    %238 = vmatpush.msra.mxu0 %v152
    %239 = vmatpush.msra.mxu0 %v151
    %240 = vmatpush.msra.mxu0 %v150
    %241 = vmatpush.msra.mxu0 %v149
    %242 = vmatpush.msra.mxu0 %v148
    %243 = vmatpush.msra.mxu0 %v147
    %244 = vmatpush.msra.mxu0 %v146
    %245 = vmatpush.msra.mxu0 %v145
    %246 = vmatpush.msra.mxu0 %v144
    %247 = vmatpush.msra.mxu0 %v143
    %248 = vmatpush.msra.mxu0 %v142
    %249 = vmatpush.msra.mxu0 %v141
    %250 = vmatmul.f32.gmra.mxu0 %v230
    %v251 = vpop.f32.mrf.mxu0
    %v252 = vadd.f32 %v232, %v251
    %253 = vdwg.mxu0
    %v254 = vtanh.pop %v252
    %v256 = vperm.slane %v174, 0
    %258 = vmatpush.msra.mxu0 %v173
    %259 = vmatpush.msra.mxu0 %v172
    %260 = vmatpush.msra.mxu0 %v171
    %261 = vmatpush.msra.mxu0 %v170
    %262 = vmatpush.msra.mxu0 %v169
    %263 = vmatpush.msra.mxu0 %v168
    %264 = vmatpush.msra.mxu0 %v167
    %265 = vmatpush.msra.mxu0 %v166
    %266 = vmatpush.msra.mxu0 %v165
    %267 = vmatpush.msra.mxu0 %v164
    %268 = vmatpush.msra.mxu0 %v163
    %269 = vmatpush.msra.mxu0 %v162
    %270 = vmatpush.msra.mxu0 %v161
    %271 = vmatpush.msra.mxu0 %v160
    %272 = vmatpush.msra.mxu0 %v159
    %273 = vmatpush.msra.mxu0 %v158
    %274 = vmatmul.f32.gmra.mxu0 %v254
    %v275 = vpop.f32.mrf.mxu0
    %v276 = vadd.f32 %v256, %v275
    %277 = vdwg.mxu0
    %278 = vst [vmem:[#allocation14] sm:$0xff] %v276
    // Predicated region
    $region70: #{tpu_custom_call.1} parent=1 // pred_check
      _
    $region71: #{tpu_custom_call.1} parent=1 // pred_check_branch
      %280 = sbr.rel (0) target = $region73
    $region72: #{tpu_custom_call.1} parent=1 // pred_region
      %282 = vsyncadd [#allocation5], 0
      %s284 = sshll.u32 [#allocation14], 4
      %s285 = int_to_ptr.vmem [resolvable:$true] %s284
      %s286 = sshll.u32 %s11, 4
      %s287 = int_to_ptr.hbm [resolvable:$true] %s286
      %289 = dma.vmem_to_hbm [thread:$0]  %s285, 128, %s287, [#allocation5]
    $region73: #{tpu_custom_call.1} parent=1 // pred_fallthru
      _
    // Predicated region
    $region74: #{tpu_custom_call.1} parent=1 // pred_check
      _
    $region75: #{tpu_custom_call.1} parent=1 // pred_check_branch
      %291 = sbr.rel (0) target = $region77
    $region76: #{tpu_custom_call.1} parent=1 // pred_region
      %293 = dma.done [#allocation5], 128
    $region77: #{tpu_custom_call.1} parent=1 // pred_fallthru
      _
    %294 = vsyncpa [#allocation4], 1
    %295 = vsyncpa [#allocation7], 1
    %296 = vsyncpa [#allocation10], 1
    %297 = vsyncpa [#allocation13], 1
    %298 = vsyncpa [#allocation5], 1

</llo_original>
